<compile_context>
chip_gen: v6e
topology: v6e:2x2x1
jax: 0.10.0
libtpu: 0.0.40
codegen_flags: <defaults>
</compile_context>

<pallas_src>
import functools

import jax
import jax.numpy as jnp
from jax.experimental import pallas as pl
from jax.experimental.pallas import tpu as pltpu


def _prelu(x, a):
    # nn.PReLU() with a single learnable slope `a`
    return jnp.where(x >= 0.0, x, a * x)


def _round_up(x, m):
    return ((x + m - 1) // m) * m


def _choose_tiles(n):
    """(tile_n, n_pad, tile_k, k_pad) for the node axis.

    Rows (output strips) and the contraction axis are padded independently.
    Small graphs (<=512 after 128-alignment) use a single block per axis
    (no waste beyond lane alignment); larger graphs use fixed strip sizes and
    accept at most one tile of padding per axis (relative waste shrinks with N,
    while the ~0.35us per-grid-step overhead does not).
    """
    p128 = _round_up(n, 128)
    if p128 <= 512:
        return p128, p128, p128, p128
    if p128 <= 1024:
        tile_n, tile_k = 256, 256
    elif p128 <= 4096:
        tile_n, tile_k = 256, 512
    else:
        tile_n, tile_k = 512, 1024
    return tile_n, _round_up(n, tile_n), tile_k, _round_up(n, tile_k)


# ---------------------------------------------------------------------------
# Pass 1: h = PReLU(BN(Linear1(PReLU(BN(Linear0(A_hat @ x))))))   (BN folded)
# ---------------------------------------------------------------------------
def _gin_layer0_kernel(a_ref, x_ref, w_ref, b_ref, alpha_ref, h_ref, acc_ref,
                       *, f_pad, h_pad):
    f32 = jnp.float32
    bf16 = jnp.bfloat16
    k = pl.program_id(1)

    @pl.when(k == 0)
    def _():
        acc_ref[...] = jnp.zeros_like(acc_ref)

    # A stored as int8 edge counts in HBM; upcast (exact for small ints) to bf16
    # for the MXU.  f32 accumulation across K blocks lives in VMEM scratch.
    a_blk = a_ref[...].astype(f32).astype(bf16)
    acc_ref[...] += jnp.dot(a_blk, x_ref[...], preferred_element_type=f32)

    @pl.when(k == pl.num_programs(1) - 1)
    def _():
        agg = acc_ref[...]                      # f32 aggregation, full precision
        # packed weights: rows [0:f_pad) = W0', rows [f_pad:) = W1' (BN folded)
        w0 = w_ref[0:f_pad, :]
        w1 = w_ref[f_pad:, :]
        b0 = b_ref[:, 0:h_pad]
        b1 = b_ref[:, h_pad:]
        # MLP matmuls stay f32 (128-wide contraction -> negligible MXU cost,
        # avoids bf16-truncating the neighbor sum).
        h = jnp.dot(agg, w0, preferred_element_type=f32) + b0
        h = _prelu(h, alpha_ref[0])             # PReLU inside MLP0
        h = jnp.dot(h, w1, preferred_element_type=f32) + b1
        h = _prelu(h, alpha_ref[1])             # PReLU in ApplyNodeFunc
        h_ref[...] = h.astype(h_ref.dtype)      # bf16 intermediate for pass 2


# ---------------------------------------------------------------------------
# Pass 2: mean = Linear3(PReLU(BN(Linear2(A_hat @ h))));  z = noise*exp(mean)+mean
# ---------------------------------------------------------------------------
def _gin_layer12_kernel(a_ref, h_ref, w_ref, b_ref, alpha_ref, noise_ref, z_ref,
                        acc_ref, *, h_pad):
    f32 = jnp.float32
    bf16 = jnp.bfloat16
    k = pl.program_id(1)

    @pl.when(k == 0)
    def _():
        acc_ref[...] = jnp.zeros_like(acc_ref)

    a_blk = a_ref[...].astype(f32).astype(bf16)
    acc_ref[...] += jnp.dot(a_blk, h_ref[...], preferred_element_type=f32)

    @pl.when(k == pl.num_programs(1) - 1)
    def _():
        agg = acc_ref[...]
        # packed weights: lanes [0:h_pad) = W2' (BN folded), lanes [h_pad:) = W3
        w2 = w_ref[:, 0:h_pad]
        w3 = w_ref[:, h_pad:]
        b2 = b_ref[:, 0:h_pad]
        b3 = b_ref[:, h_pad:]
        t = jnp.dot(agg, w2, preferred_element_type=f32) + b2
        t = _prelu(t, alpha_ref[2])             # PReLU inside MLP2
        mean = jnp.dot(t, w3, preferred_element_type=f32) + b3
        # layers[1] and layers[2] share the same MLP and (identity-dropout)
        # input, so logstd == mean in eval mode.
        z_ref[...] = noise_ref[...] * jnp.exp(mean) + mean


# ---------------------------------------------------------------------------
# Host wrapper
# ---------------------------------------------------------------------------
def vgin_forward(x, a_hat, params, noise):
    N, in_dim = x.shape
    hid = params["w0"].shape[1]
    out_dim = params["w3"].shape[1]
    f32, bf16 = jnp.float32, jnp.bfloat16

    # lane-pad the (tiny) feature dims to 128 -> unmasked stores, full MXU width
    f_pad = _round_up(in_dim, 128)
    h_pad = _round_up(hid, 128)
    o_pad = _round_up(out_dim, 128)

    tile_n, n_pad, tile_k, k_pad = _choose_tiles(N)
    grid = (n_pad // tile_n, k_pad // tile_k)   # (row strips, K blocks)

    # --- fold eval-mode BatchNorm into the preceding Linear (host, f32) ---
    def fold(w, b, s, t):
        return w * s, b * s + t

    w0, b0 = fold(params["w0"], params["b0"], params["s1"], params["t1"])
    w1, b1 = fold(params["w1"], params["b1"], params["s2"], params["t2"])
    w2, b2 = fold(params["w2"], params["b2"], params["s3"], params["t3"])
    w3, b3 = params["w3"], params["b3"]

    def pad2(m, r, c):
        return jnp.pad(m, ((0, r - m.shape[0]), (0, c - m.shape[1])))

    # --- pack the small parameter tensors: 1 weight ref + 1 bias ref per pass ---
    # Weights stay f32 (tiny) so the aggregation result is never bf16-truncated.
    w01 = jnp.concatenate([pad2(w0, f_pad, h_pad),
                           pad2(w1, h_pad, h_pad)], axis=0).astype(f32)
    b01 = jnp.concatenate([pad2(b0, 1, h_pad),
                           pad2(b1, 1, h_pad)], axis=1).astype(f32)
    w23 = jnp.concatenate([pad2(w2, h_pad, h_pad),
                           pad2(w3, h_pad, o_pad)], axis=1).astype(f32)
    b23 = jnp.concatenate([pad2(b2, 1, h_pad),
                           pad2(b3, 1, o_pad)], axis=1).astype(f32)
    alpha = params["alpha"].astype(f32)

    # A at 1 byte/element (edge counts are small ints, exact for counts <= 127);
    # upcast to bf16 in-kernel.  X / h are bf16 MXU operands.
    a_p = pad2(a_hat, n_pad, k_pad).astype(jnp.int8)
    x_p = pad2(x, k_pad, f_pad).astype(bf16)
    noise_p = pad2(noise, n_pad, o_pad).astype(f32)

    smem_spec = pl.BlockSpec(memory_space=pltpu.MemorySpace.SMEM)

    # ---------------- pass 1: layer 0 -> h (bf16) ----------------
    h_bf = pl.pallas_call(
        functools.partial(_gin_layer0_kernel, f_pad=f_pad, h_pad=h_pad),
        out_shape=jax.ShapeDtypeStruct((n_pad, h_pad), bf16),
        grid_spec=pltpu.PrefetchScalarGridSpec(
            num_scalar_prefetch=0,
            grid=grid,
            in_specs=[
                pl.BlockSpec((tile_n, tile_k), lambda i, k: (i, k)),        # A tile
                pl.BlockSpec((tile_k, f_pad), lambda i, k: (k, 0)),         # X K-block
                pl.BlockSpec((f_pad + h_pad, h_pad), lambda i, k: (0, 0)),  # W0|W1
                pl.BlockSpec((1, 2 * h_pad), lambda i, k: (0, 0)),          # b0|b1
                smem_spec,                                                  # PReLU slopes
            ],
            out_specs=pl.BlockSpec((tile_n, h_pad), lambda i, k: (i, 0)),
            scratch_shapes=[pltpu.VMEM((tile_n, h_pad), jnp.float32)],      # agg acc
        ),
        compiler_params=pltpu.CompilerParams(
            dimension_semantics=("parallel", "arbitrary"),  # rows across TCs, K serial
        ),
        cost_estimate=pl.CostEstimate(
            flops=2 * n_pad * (k_pad * f_pad + f_pad * h_pad + h_pad * h_pad),
            transcendentals=0,
            bytes_accessed=n_pad * k_pad + k_pad * f_pad * 2
            + (f_pad + h_pad) * h_pad * 4 + 2 * h_pad * 4 + n_pad * h_pad * 2,
        ),
    )(a_p, x_p, w01, b01, alpha)

    # pass 2 aggregates over A's columns, so its RHS needs k_pad rows of h.
    # Rows >= N of A are zero columns, so padded h rows contribute nothing.
    if k_pad == n_pad:
        h_k = h_bf
    elif k_pad < n_pad:
        h_k = h_bf[:k_pad]
    else:
        h_k = jnp.pad(h_bf, ((0, k_pad - n_pad), (0, 0)))

    # ---------------- pass 2: shared layers 1&2 -> sampled z ----------------
    z_p = pl.pallas_call(
        functools.partial(_gin_layer12_kernel, h_pad=h_pad),
        out_shape=jax.ShapeDtypeStruct((n_pad, o_pad), f32),
        grid_spec=pltpu.PrefetchScalarGridSpec(
            num_scalar_prefetch=0,
            grid=grid,
            in_specs=[
                pl.BlockSpec((tile_n, tile_k), lambda i, k: (i, k)),          # A tile
                pl.BlockSpec((tile_k, h_pad), lambda i, k: (k, 0)),           # h K-block
                pl.BlockSpec((h_pad, h_pad + o_pad), lambda i, k: (0, 0)),    # W2|W3
                pl.BlockSpec((1, h_pad + o_pad), lambda i, k: (0, 0)),        # b2|b3
                smem_spec,                                                    # PReLU slopes
                pl.BlockSpec((tile_n, o_pad), lambda i, k: (i, 0)),           # noise strip
            ],
            out_specs=pl.BlockSpec((tile_n, o_pad), lambda i, k: (i, 0)),
            scratch_shapes=[pltpu.VMEM((tile_n, h_pad), jnp.float32)],        # agg acc
        ),
        compiler_params=pltpu.CompilerParams(
            dimension_semantics=("parallel", "arbitrary"),
        ),
        cost_estimate=pl.CostEstimate(
            flops=2 * n_pad * (k_pad * h_pad + h_pad * h_pad + h_pad * o_pad),
            transcendentals=n_pad * o_pad,
            bytes_accessed=n_pad * k_pad + k_pad * h_pad * 2
            + h_pad * (h_pad + o_pad) * 4 + (h_pad + o_pad) * 4
            + n_pad * o_pad * 4 + n_pad * o_pad * 4,
        ),
    )(a_p, h_k, w23, b23, alpha, noise_p)

    # strip node / lane padding
    return z_p[:N, :out_dim]


# ---------------------------------------------------------------------------
# Synthetic parameters + references
# ---------------------------------------------------------------------------
def _init_params(key, in_dim, hid, out_dim):
    """Deterministic synthetic params (PyTorch Linear weights pre-transposed to [in,out])."""
    ks = jax.random.split(key, 12)
    bn_eps = 1e-5

    def lin(k, fin, fout):
        kw, kb = jax.random.split(k)
        bound = 1.0 / jnp.sqrt(fin)
        w = jax.random.uniform(kw, (fin, fout), jnp.float32, -bound, bound)
        b = jax.random.uniform(kb, (1, fout), jnp.float32, -bound, bound)
        return w, b

    def bn(k, dim):
        kg, kb = jax.random.split(k)
        gamma = 1.0 + 0.1 * jax.random.normal(kg, (1, dim), jnp.float32)
        beta = 0.1 * jax.random.normal(kb, (1, dim), jnp.float32)
        running_mean = jnp.zeros((1, dim), jnp.float32)
        running_var = jnp.ones((1, dim), jnp.float32)
        scale = gamma / jnp.sqrt(running_var + bn_eps)
        shift = beta - running_mean * scale
        return scale, shift

    w0, b0 = lin(ks[0], in_dim, hid)
    s1, t1 = bn(ks[1], hid)
    w1, b1 = lin(ks[2], hid, hid)
    s2, t2 = bn(ks[3], hid)
    w2, b2 = lin(ks[4], hid, hid)
    s3, t3 = bn(ks[5], hid)
    w3, b3 = lin(ks[6], hid, out_dim)
    alpha = jnp.full((3,), 0.25, jnp.float32)     # nn.PReLU() default init
    return dict(w0=w0, b0=b0, s1=s1, t1=t1, w1=w1, b1=b1, s2=s2, t2=t2,
                w2=w2, b2=b2, s3=s3, t3=t3, w3=w3, b3=b3, alpha=alpha)


def _reference(x, a_hat, p, noise, *, mirror_kernel=True):
    """Pure-JAX mirror of the eval-mode forward.

    mirror_kernel=True replicates the kernel's only lossy steps (bf16 storage of
    X and of the intermediate h); everything else (aggregation products, MLP
    matmuls) is f32 in both kernel and reference.
    """
    f32 = jnp.float32

    def prelu(v, a):
        return jnp.where(v >= 0.0, v, a * v)

    def cast(v):
        return v.astype(jnp.bfloat16).astype(f32) if mirror_kernel else v

    def mm(a, b):
        return jnp.dot(a, b, precision=jax.lax.Precision.HIGHEST)

    def fold(w, b, s, t):
        return w * s, b * s + t

    w0, b0 = fold(p["w0"], p["b0"], p["s1"], p["t1"])
    w1, b1 = fold(p["w1"], p["b1"], p["s2"], p["t2"])
    w2, b2 = fold(p["w2"], p["b2"], p["s3"], p["t3"])
    w3, b3 = p["w3"], p["b3"]
    a = a_hat.astype(f32)

    agg0 = mm(a, cast(x))
    h = prelu(mm(agg0, w0) + b0, p["alpha"][0])
    h = prelu(mm(h, w1) + b1, p["alpha"][1])
    agg1 = mm(a, cast(h))
    t = prelu(mm(agg1, w2) + b2, p["alpha"][2])
    mean = mm(t, w3) + b3
    logstd = mean            # shared MLP between layers[1] and layers[2] (eval mode)
    return noise * jnp.exp(logstd) + mean


def _ring_graph(n):
    """Deterministic ring graph: edges i -> i+1 and i+1 -> i (mod n), plus self-loops."""
    src = jnp.concatenate([jnp.arange(n), (jnp.arange(n) + 1) % n])
    dst = jnp.concatenate([(jnp.arange(n) + 1) % n, jnp.arange(n)])
    adj = jnp.zeros((n, n), jnp.float32).at[dst, src].add(1.0)   # A[i, j] = #edges j->i
    return adj + jnp.eye(n, dtype=jnp.float32)                   # GIN eps=0


def _run_case(n_nodes, in_dim, hid, out_dim, params, seed):
    k_x, k_n = jax.random.split(jax.random.PRNGKey(seed), 2)
    x = jax.random.normal(k_x, (n_nodes, in_dim), jnp.float32)
    a_hat = _ring_graph(n_nodes)
    noise = jax.random.normal(k_n, (n_nodes, out_dim), jnp.float32)

    out = jax.block_until_ready(vgin_forward(x, a_hat, params, noise))

    assert out.shape == (n_nodes, out_dim)
    assert out.dtype == jnp.float32
    assert jnp.all(jnp.isfinite(out))

    # tight check vs a reference mirroring the kernel's bf16 storage of x / h
    ref_mirror = _reference(x, a_hat, params, noise, mirror_kernel=True)
    assert jnp.allclose(out, ref_mirror, atol=2e-3, rtol=2e-3), \
        float(jnp.max(jnp.abs(out - ref_mirror)))

    # sanity check vs full-f32 module semantics (tolerance = bf16 input rounding)
    ref_f32 = _reference(x, a_hat, params, noise, mirror_kernel=False)
    assert jnp.allclose(out, ref_f32, atol=1e-1, rtol=1e-1), \
        float(jnp.max(jnp.abs(out - ref_f32)))


if __name__ == "__main__":
    in_dim, hid, out_dim = 16, 32, 8
    params = _init_params(jax.random.PRNGKey(0), in_dim, hid, out_dim)

    # small graph: single block per axis
    _run_case(32, in_dim, hid, out_dim, params, seed=1)
    # larger graph: exercises multi-block row strips, K-tiled accumulation and
    # the decoupled row/column padding (n_pad != k_pad) path
    _run_case(1100, in_dim, hid, out_dim, params, seed=2)

    print("KERNEL_OK")
</pallas_src>

<mosaic_0001>
module attributes {stable_mosaic.version = 11 : i64} {
  func.func @_gin_layer0_kernel(%arg0: i32, %arg1: i32, %arg2: memref<128x128xi8, #tpu.memory_space<vmem>>, %arg3: memref<128x128xbf16, #tpu.memory_space<vmem>>, %arg4: memref<256x128xf32, #tpu.memory_space<vmem>>, %arg5: memref<1x256xf32, #tpu.memory_space<vmem>>, %arg6: memref<3xf32, #tpu.memory_space<smem>>, %arg7: memref<128x128xbf16, #tpu.memory_space<vmem>>, %arg8: memref<128x128xf32, #tpu.memory_space<vmem>>) attributes {dimension_semantics = [#tpu.dimension_semantics<parallel>, #tpu.dimension_semantics<arbitrary>], iteration_bounds = array<i64: 1, 1>, scalar_prefetch = 0 : i64, scratch_operands = 1 : i64, tpu.core_type = #tpu.core_type<tc>, window_params = [{transform_indices = @transform_0, window_bounds = array<i64: 128, 128>}, {transform_indices = @transform_1, window_bounds = array<i64: 128, 128>}, {pipeline_mode = #tpu.pipeline_mode<synchronous>, transform_indices = @transform_2, window_bounds = array<i64: 256, 128>}, {pipeline_mode = #tpu.pipeline_mode<synchronous>, transform_indices = @transform_3, window_bounds = array<i64: 1, 256>}, {transform_indices = @transform_4, window_bounds = array<i64: 3>}, {transform_indices = @transform_5, window_bounds = array<i64: 128, 128>}]} {
    %c0_i32 = arith.constant 0 : i32
    %0 = arith.cmpi eq, %arg1, %c0_i32 : i32
    %1 = arith.extui %0 : i1 to i32
    %c0_i32_0 = arith.constant 0 : i32
    %2 = arith.cmpi ne, %1, %c0_i32_0 : i32
    scf.if %2 {
      %cst_10 = arith.constant 0.000000e+00 : f32
      %14 = vector.broadcast %cst_10 : f32 to vector<128x128xf32>
      %c0_11 = arith.constant 0 : index
      %c0_12 = arith.constant 0 : index
      %15 = vector.load %arg8[%c0_11, %c0_12] : memref<128x128xf32, #tpu.memory_space<vmem>>, vector<128x128xf32>
      tpu.vector_store %arg8[%c0_11, %c0_12], %14 {strides = array<i32>} : memref<128x128xf32, #tpu.memory_space<vmem>>, vector<128x128xf32>,
    } else {
    }
    %c0 = arith.constant 0 : index
    %c0_1 = arith.constant 0 : index
    %3 = vector.load %arg2[%c0, %c0_1] : memref<128x128xi8, #tpu.memory_space<vmem>>, vector<128x128xi8>
    %4 = arith.sitofp %3 : vector<128x128xi8> to vector<128x128xf32>
    %5 = arith.truncf %4 : vector<128x128xf32> to vector<128x128xbf16>
    %c0_2 = arith.constant 0 : index
    %c0_3 = arith.constant 0 : index
    %6 = vector.load %arg8[%c0_2, %c0_3] : memref<128x128xf32, #tpu.memory_space<vmem>>, vector<128x128xf32>
    %c0_4 = arith.constant 0 : index
    %c0_5 = arith.constant 0 : index
    %7 = vector.load %arg3[%c0_4, %c0_5] : memref<128x128xbf16, #tpu.memory_space<vmem>>, vector<128x128xbf16>
    %cst = arith.constant dense<0.000000e+00> : vector<128x128xf32>
    %8 = tpu.matmul %5, %7, %cst {dimension_numbers = #tpu.dot_dimension_numbers<[1], [0], [0], [1], [0, 0, 1, 1], [], []>} : vector<128x128xbf16>, vector<128x128xbf16>, vector<128x128xf32> -> vector<128x128xf32>
    %9 = arith.addf %6, %8 : vector<128x128xf32>
    %c0_6 = arith.constant 0 : index
    %c0_7 = arith.constant 0 : index
    %10 = vector.load %arg8[%c0_6, %c0_7] : memref<128x128xf32, #tpu.memory_space<vmem>>, vector<128x128xf32>
    tpu.vector_store %arg8[%c0_6, %c0_7], %9 {strides = array<i32>} : memref<128x128xf32, #tpu.memory_space<vmem>>, vector<128x128xf32>,
    %c0_i32_8 = arith.constant 0 : i32
    %11 = arith.cmpi eq, %arg1, %c0_i32_8 : i32
    %12 = arith.extui %11 : i1 to i32
    %c0_i32_9 = arith.constant 0 : i32
    %13 = arith.cmpi ne, %12, %c0_i32_9 : i32
    scf.if %13 {
      %c0_10 = arith.constant 0 : index
      %c0_11 = arith.constant 0 : index
      %14 = vector.load %arg8[%c0_10, %c0_11] : memref<128x128xf32, #tpu.memory_space<vmem>>, vector<128x128xf32>
      %c0_12 = arith.constant 0 : index
      %c0_13 = arith.constant 0 : index
      %15 = vector.load %arg4[%c0_12, %c0_13] : memref<256x128xf32, #tpu.memory_space<vmem>>, vector<128x128xf32>
      %c128 = arith.constant 128 : index
      %c0_14 = arith.constant 0 : index
      %16 = vector.load %arg4[%c128, %c0_14] : memref<256x128xf32, #tpu.memory_space<vmem>>, vector<128x128xf32>
      %c0_15 = arith.constant 0 : index
      %c0_16 = arith.constant 0 : index
      %17 = vector.load %arg5[%c0_15, %c0_16] : memref<1x256xf32, #tpu.memory_space<vmem>>, vector<1x128xf32>
      %c0_17 = arith.constant 0 : index
      %c128_18 = arith.constant 128 : index
      %18 = vector.load %arg5[%c0_17, %c128_18] : memref<1x256xf32, #tpu.memory_space<vmem>>, vector<1x128xf32>
      %cst_19 = arith.constant dense<0.000000e+00> : vector<128x128xf32>
      %19 = tpu.matmul %14, %15, %cst_19 {dimension_numbers = #tpu.dot_dimension_numbers<[1], [0], [0], [1], [0, 0, 1, 1], [], []>} : vector<128x128xf32>, vector<128x128xf32>, vector<128x128xf32> -> vector<128x128xf32>
      %20 = vector.broadcast %17 : vector<1x128xf32> to vector<128x128xf32>
      %21 = arith.addf %19, %20 : vector<128x128xf32>
      %c0_20 = arith.constant 0 : index
      %22 = memref.load %arg6[%c0_20] : memref<3xf32, #tpu.memory_space<smem>>
      %cst_21 = arith.constant 0.000000e+00 : f32
      %23 = vector.broadcast %cst_21 : f32 to vector<128x128xf32>
      %24 = arith.cmpf oge, %21, %23 : vector<128x128xf32>
      %25 = vector.broadcast %22 : f32 to vector<128x128xf32>
      %26 = arith.mulf %25, %21 : vector<128x128xf32>
      %27 = arith.select %24, %21, %26 : vector<128x128xi1>, vector<128x128xf32>
      %cst_22 = arith.constant dense<0.000000e+00> : vector<128x128xf32>
      %28 = tpu.matmul %27, %16, %cst_22 {dimension_numbers = #tpu.dot_dimension_numbers<[1], [0], [0], [1], [0, 0, 1, 1], [], []>} : vector<128x128xf32>, vector<128x128xf32>, vector<128x128xf32> -> vector<128x128xf32>
      %29 = vector.broadcast %18 : vector<1x128xf32> to vector<128x128xf32>
      %30 = arith.addf %28, %29 : vector<128x128xf32>
      %c1 = arith.constant 1 : index
      %31 = memref.load %arg6[%c1] : memref<3xf32, #tpu.memory_space<smem>>
      %cst_23 = arith.constant 0.000000e+00 : f32
      %32 = vector.broadcast %cst_23 : f32 to vector<128x128xf32>
      %33 = arith.cmpf oge, %30, %32 : vector<128x128xf32>
      %34 = vector.broadcast %31 : f32 to vector<128x128xf32>
      %35 = arith.mulf %34, %30 : vector<128x128xf32>
      %36 = arith.select %33, %30, %35 : vector<128x128xi1>, vector<128x128xf32>
      %37 = arith.truncf %36 : vector<128x128xf32> to vector<128x128xbf16>
      %c0_24 = arith.constant 0 : index
      %c0_25 = arith.constant 0 : index
      %38 = vector.load %arg7[%c0_24, %c0_25] : memref<128x128xbf16, #tpu.memory_space<vmem>>, vector<128x128xbf16>
      tpu.vector_store %arg7[%c0_24, %c0_25], %37 {strides = array<i32>} : memref<128x128xbf16, #tpu.memory_space<vmem>>, vector<128x128xbf16>,
    } else {
    }
    return
  }
  func.func @transform_0(%arg0: i32, %arg1: i32) -> (i32, i32) {
    %c0_i32 = arith.constant 0 : i32
    return %arg0, %arg1 : i32, i32
  }
  func.func @transform_1(%arg0: i32, %arg1: i32) -> (i32, i32) {
    %c0_i32 = arith.constant 0 : i32
    %c0_i32_0 = arith.constant 0 : i32
    return %arg1, %c0_i32 : i32, i32
  }
  func.func @transform_2(%arg0: i32, %arg1: i32) -> (i32, i32) {
    %c0_i32 = arith.constant 0 : i32
    %c0_i32_0 = arith.constant 0 : i32
    %c0_i32_1 = arith.constant 0 : i32
    return %c0_i32, %c0_i32_0 : i32, i32
  }
  func.func @transform_3(%arg0: i32, %arg1: i32) -> (i32, i32) {
    %c0_i32 = arith.constant 0 : i32
    %c0_i32_0 = arith.constant 0 : i32
    %c0_i32_1 = arith.constant 0 : i32
    return %c0_i32, %c0_i32_0 : i32, i32
  }
  func.func @transform_4(%arg0: i32, %arg1: i32) -> i32 {
    %c0_i32 = arith.constant 0 : i32
    %c0_i32_0 = arith.constant 0 : i32
    return %c0_i32 : i32
  }
  func.func @transform_5(%arg0: i32, %arg1: i32) -> (i32, i32) {
    %c0_i32 = arith.constant 0 : i32
    %c0_i32_0 = arith.constant 0 : i32
    return %arg0, %c0_i32 : i32, i32
  }
}

</mosaic_0001>

<llo_original>
// kernel: tpu_custom_call.1
$region0: #{tpu_custom_call.1}
  #allocation0 [shape = 'u32[]', space=smem, size = 0x4, offset = 0x4, fixed_abs, tag = 'smem constant byte address 0x4 - core index']
  #allocation1 [shape = 'u32[144,128]{1,0:T(1,128)}', space=vmem, size = 0x12000, scoped, tag = 'internal scratch']
  #allocation2 [shape = 'f32[128,128]{1,0:T(8,128)}', space=vmem, size = 0x10000, scoped, tag = 'scratch operand']
  %s0 = inlined_call_operand.hbm [shape: s8[128,128], index: 0, kind: input, shape index: {}]
  %s1 = inlined_call_operand.hbm [shape: bf16[128,128], index: 1, kind: input, shape index: {}]
  %s2 = inlined_call_operand.hbm [shape: f32[256,128], index: 2, kind: input, shape index: {}]
  %s3 = inlined_call_operand.vmem [shape: f32[1,256], index: 3, kind: input, shape index: {}]
  %s4 = inlined_call_operand.vmem [shape: f32[3], index: 4, kind: input, shape index: {}]
  %s5 = inlined_call_operand.hbm [shape: bf16[128,128], index: 5, kind: output, shape index: {}]
  %s6 = sld [smem:[#allocation0]]
  $region54: #{tpu_custom_call.1} parent=0
    _
  %s8 = ssub.s32 1, %s6
  %s9 = scalar_select 0, %s8, %s6
  $region1: #{tpu_custom_call.1} parent=0
    #allocation3 [shape = 'u8[16384]{0}', space=vmem, size = 0x4000, scoped, tag = 'input window, operand 0, single buffered']
    #allocation4 [shape = 's32[1]{0}', space=sflag, size = 0x4, scoped, tag = 'scoped memory for tpu_custom_call.1']
    #allocation5 [shape = 's32[1]{0}', space=sflag, size = 0x4, scoped, tag = 'scoped memory for tpu_custom_call.1']
    #allocation6 [shape = 's32[1]{0}', space=sflag, size = 0x4, scoped, tag = 'scoped memory for tpu_custom_call.1']
    #allocation7 [shape = 'u8[32768]{0}', space=vmem, size = 0x8000, scoped, tag = 'input window, operand 1, single buffered']
    #allocation8 [shape = 's32[1]{0}', space=sflag, size = 0x4, scoped, tag = 'scoped memory for tpu_custom_call.1']
    #allocation9 [shape = 'u8[131072]{0}', space=vmem, size = 0x20000, scoped, tag = 'input window, operand 2, single buffered']
    #allocation10 [shape = 'u8[512]{0}', space=smem, size = 0x200, scoped, tag = 'input window, operand 4, single buffered']
    #allocation11 [shape = 'u8[32768]{0}', space=vmem, size = 0x8000, scoped, tag = 'output window, operand 0, single buffered']
    %10 = vsyncpa [#allocation4], 0
    %11 = vsyncpa [#allocation8], 0
    %12 = vsyncpa [#allocation6], 0
    %13 = vsyncpa [#allocation5], 0
    // Predicated region
    $region2: #{tpu_custom_call.1} parent=1 // pred_check
      _
    $region3: #{tpu_custom_call.1} parent=1 // pred_check_branch
      %15 = sbr.rel (0) target = $region5
    $region4: #{tpu_custom_call.1} parent=1 // pred_region
      %s17 = ssub.s32 512, 512
      %18 = vsyncadd [#allocation4], %s17
      %s19 = sshll.u32 [#allocation3], 4
      %s20 = int_to_ptr.vmem [resolvable:$true] %s19
      %25 = dma.hbm_to_vmem [thread:$0]  %s0, 512, %s20, [#allocation4], 128, 128, 8
    $region5: #{tpu_custom_call.1} parent=1 // pred_fallthru
      _
    // Predicated region
    $region6: #{tpu_custom_call.1} parent=1 // pred_check
      _
    $region7: #{tpu_custom_call.1} parent=1 // pred_check_branch
      %27 = sbr.rel (0) target = $region9
    $region8: #{tpu_custom_call.1} parent=1 // pred_region
      %s29 = ssub.s32 1024, 1024
      %30 = vsyncadd [#allocation8], %s29
      %s31 = sshll.u32 [#allocation7], 4
      %s32 = int_to_ptr.vmem [resolvable:$true] %s31
      %37 = dma.hbm_to_vmem [thread:$0]  %s1, 1024, %s32, [#allocation8], 64, 64, 4
    $region9: #{tpu_custom_call.1} parent=1 // pred_fallthru
      _
    // Predicated region
    $region10: #{tpu_custom_call.1} parent=1 // pred_check
      _
    $region11: #{tpu_custom_call.1} parent=1 // pred_check_branch
      %39 = sbr.rel (0) target = $region13
    $region12: #{tpu_custom_call.1} parent=1 // pred_region
      %s41 = ssub.s32 4096, 4096
      %42 = vsyncadd [#allocation8], %s41
      %s43 = sshll.u32 [#allocation9], 4
      %s44 = int_to_ptr.vmem [resolvable:$true] %s43
      %49 = dma.hbm_to_vmem [thread:$0]  %s2, 4096, %s44, [#allocation8], 128, 128, 8
    $region13: #{tpu_custom_call.1} parent=1 // pred_fallthru
      _
    // Predicated region
    $region14: #{tpu_custom_call.1} parent=1 // pred_check
      _
    $region15: #{tpu_custom_call.1} parent=1 // pred_check_branch
      %51 = sbr.rel (0) target = $region17
    $region16: #{tpu_custom_call.1} parent=1 // pred_region
      _
    $region17: #{tpu_custom_call.1} parent=1 // pred_fallthru
      _
    // Predicated region
    $region18: #{tpu_custom_call.1} parent=1 // pred_check
      _
    $region19: #{tpu_custom_call.1} parent=1 // pred_check_branch
      %53 = sbr.rel (0) target = $region21
    $region20: #{tpu_custom_call.1} parent=1 // pred_region
      %s55 = ssub.s32 16, 16
      %56 = vsyncadd [#allocation6], %s55
      %s58 = sshll.u32 %s4, 4
      %s59 = int_to_ptr.vmem [resolvable:$true] %s58
      %61 = dma.vmem_to_smem %s59, 16, [#allocation10], [#allocation6]
    $region21: #{tpu_custom_call.1} parent=1 // pred_fallthru
      _
    // Predicated region
    $region22: #{tpu_custom_call.1} parent=1 // pred_check
      _
    $region23: #{tpu_custom_call.1} parent=1 // pred_check_branch
      %63 = sbr.rel (0) target = $region25
    $region24: #{tpu_custom_call.1} parent=1 // pred_region
      %64 = dma.done [#allocation4], 512
    $region25: #{tpu_custom_call.1} parent=1 // pred_fallthru
      _
    // Predicated region
    $region26: #{tpu_custom_call.1} parent=1 // pred_check
      _
    $region27: #{tpu_custom_call.1} parent=1 // pred_check_branch
      %66 = sbr.rel (0) target = $region29
    $region28: #{tpu_custom_call.1} parent=1 // pred_region
      %67 = dma.done [#allocation8], 1024
    $region29: #{tpu_custom_call.1} parent=1 // pred_fallthru
      _
    // Predicated region
    $region30: #{tpu_custom_call.1} parent=1 // pred_check
      _
    $region31: #{tpu_custom_call.1} parent=1 // pred_check_branch
      %69 = sbr.rel (0) target = $region33
    $region32: #{tpu_custom_call.1} parent=1 // pred_region
      %70 = dma.done [#allocation8], 4096
    $region33: #{tpu_custom_call.1} parent=1 // pred_fallthru
      _
    // Predicated region
    $region34: #{tpu_custom_call.1} parent=1 // pred_check
      _
    $region35: #{tpu_custom_call.1} parent=1 // pred_check_branch
      %72 = sbr.rel (0) target = $region37
    $region36: #{tpu_custom_call.1} parent=1 // pred_region
      %73 = dma.done [#allocation6], 16
    $region37: #{tpu_custom_call.1} parent=1 // pred_fallthru
      _
    %74 = sfence
    %p76 = scmp.eq.s32.totalorder 0, 0
    // Predicated region
    $region38: #{tpu_custom_call.1} parent=1 // pred_check
      %p77 = pneg %p76
    $region39: #{tpu_custom_call.1} parent=1 // pred_check_branch
      %79 = sbr.rel (%p77) target = $region41
    $region40: #{tpu_custom_call.1} parent=1 // pred_region
      %80 = vst [vmem:[#allocation2] sm:$0xff] 0.0
      %81 = vst [vmem:[#allocation2 + $0x8] sm:$0xff] 0.0
      %82 = vst [vmem:[#allocation2 + $0x10] sm:$0xff] 0.0
      %83 = vst [vmem:[#allocation2 + $0x18] sm:$0xff] 0.0
      %84 = vst [vmem:[#allocation2 + $0x20] sm:$0xff] 0.0
      %85 = vst [vmem:[#allocation2 + $0x28] sm:$0xff] 0.0
      %86 = vst [vmem:[#allocation2 + $0x30] sm:$0xff] 0.0
      %87 = vst [vmem:[#allocation2 + $0x38] sm:$0xff] 0.0
      %88 = vst [vmem:[#allocation2 + $0x40] sm:$0xff] 0.0
      %89 = vst [vmem:[#allocation2 + $0x48] sm:$0xff] 0.0
      %90 = vst [vmem:[#allocation2 + $0x50] sm:$0xff] 0.0
      %91 = vst [vmem:[#allocation2 + $0x58] sm:$0xff] 0.0
      %92 = vst [vmem:[#allocation2 + $0x60] sm:$0xff] 0.0
      %93 = vst [vmem:[#allocation2 + $0x68] sm:$0xff] 0.0
      %94 = vst [vmem:[#allocation2 + $0x70] sm:$0xff] 0.0
      %95 = vst [vmem:[#allocation2 + $0x78] sm:$0xff] 0.0
    $region41: #{tpu_custom_call.1} parent=1 // pred_fallthru
      _
    %v96 = vld [vmem:[#allocation3] sm:$0xff]
    %v97 = vld [vmem:[#allocation3 + $0x8] sm:$0xff]
    %v98 = vld [vmem:[#allocation3 + $0x10] sm:$0xff]
    %v99 = vld [vmem:[#allocation3 + $0x18] sm:$0xff]
    %v100 = vunpack.c.l.s8.bf16 %v96
    %v101 = vunpack.c.h.s8.bf16 %v96
    %v102 = vunpack.c.l.s8.bf16 %v97
    %v103 = vunpack.c.h.s8.bf16 %v97
    %v104 = vunpack.c.l.s8.bf16 %v98
    %v105 = vunpack.c.h.s8.bf16 %v98
    %v106 = vunpack.c.l.s8.bf16 %v99
    %v107 = vunpack.c.h.s8.bf16 %v99
    %v108 = vld [vmem:[#allocation2] sm:$0xff]
    %v109 = vld [vmem:[#allocation2 + $0x8] sm:$0xff]
    %v110 = vld [vmem:[#allocation2 + $0x10] sm:$0xff]
    %v111 = vld [vmem:[#allocation2 + $0x18] sm:$0xff]
    %v112 = vld [vmem:[#allocation2 + $0x20] sm:$0xff]
    %v113 = vld [vmem:[#allocation2 + $0x28] sm:$0xff]
    %v114 = vld [vmem:[#allocation2 + $0x30] sm:$0xff]
    %v115 = vld [vmem:[#allocation2 + $0x38] sm:$0xff]
    %v116 = vld [vmem:[#allocation2 + $0x40] sm:$0xff]
    %v117 = vld [vmem:[#allocation2 + $0x48] sm:$0xff]
    %v118 = vld [vmem:[#allocation2 + $0x50] sm:$0xff]
    %v119 = vld [vmem:[#allocation2 + $0x58] sm:$0xff]
    %v120 = vld [vmem:[#allocation2 + $0x60] sm:$0xff]
    %v121 = vld [vmem:[#allocation2 + $0x68] sm:$0xff]
    %v122 = vld [vmem:[#allocation2 + $0x70] sm:$0xff]
    %v123 = vld [vmem:[#allocation2 + $0x78] sm:$0xff]
    %v124 = vld [vmem:[#allocation7] sm:$0xf]
    %v125 = vld [vmem:[#allocation7 + $0x4] sm:$0xf]
    %v126 = vld [vmem:[#allocation7 + $0x8] sm:$0xf]
    %v127 = vld [vmem:[#allocation7 + $0xc] sm:$0xf]
    %v128 = vld [vmem:[#allocation7 + $0x10] sm:$0xf]
    %v129 = vld [vmem:[#allocation7 + $0x14] sm:$0xf]
    %v130 = vld [vmem:[#allocation7 + $0x18] sm:$0xf]
    %v131 = vld [vmem:[#allocation7 + $0x1c] sm:$0xf]
    %v132 = vld [vmem:[#allocation7 + $0x20] sm:$0xf]
    %v133 = vld [vmem:[#allocation7 + $0x24] sm:$0xf]
    %v134 = vld [vmem:[#allocation7 + $0x28] sm:$0xf]
    %v135 = vld [vmem:[#allocation7 + $0x2c] sm:$0xf]
    %v136 = vld [vmem:[#allocation7 + $0x30] sm:$0xf]
    %v137 = vld [vmem:[#allocation7 + $0x34] sm:$0xf]
    %v138 = vld [vmem:[#allocation7 + $0x38] sm:$0xf]
    %v139 = vld [vmem:[#allocation7 + $0x3c] sm:$0xf]
    %v156 = vunpack.c.l.b16 %v124
    %v157 = vunpack.c.l.b16 %v125
    %v158 = vunpack.c.l.b16 %v126
    %v159 = vunpack.c.l.b16 %v127
    %v160 = vunpack.c.l.b16 %v128
    %v161 = vunpack.c.l.b16 %v129
    %v162 = vunpack.c.l.b16 %v130
    %v163 = vunpack.c.l.b16 %v131
    %v164 = vunpack.c.l.b16 %v132
    %v165 = vunpack.c.l.b16 %v133
    %v166 = vunpack.c.l.b16 %v134
    %v167 = vunpack.c.l.b16 %v135
    %v168 = vunpack.c.l.b16 %v136
    %v169 = vunpack.c.l.b16 %v137
    %v170 = vunpack.c.l.b16 %v138
    %v171 = vunpack.c.l.b16 %v139
    %v172 = vpack.c.b16 %v157, %v156
    %v173 = vpack.c.b16 %v159, %v158
    %v174 = vpack.c.b16 %v161, %v160
    %v175 = vpack.c.b16 %v163, %v162
    %v176 = vpack.c.b16 %v165, %v164
    %v177 = vpack.c.b16 %v167, %v166
    %v178 = vpack.c.b16 %v169, %v168
    %v179 = vpack.c.b16 %v171, %v170
    %188 = vmatprep.subr.bf16.mxu0 0
    %189 = vmatpush1.bf16.msra.mxu0 %v179
    %190 = vmatprep.subr.bf16.mxu0 0
    %191 = vmatpush1.bf16.msra.mxu0 %v178
    %192 = vmatprep.subr.bf16.mxu0 0
    %193 = vmatpush1.bf16.msra.mxu0 %v177
    %194 = vmatprep.subr.bf16.mxu0 0
    %195 = vmatpush1.bf16.msra.mxu0 %v176
    %196 = vmatprep.subr.bf16.mxu0 0
    %197 = vmatpush1.bf16.msra.mxu0 %v175
    %198 = vmatprep.subr.bf16.mxu0 0
    %199 = vmatpush1.bf16.msra.mxu0 %v174
    %200 = vmatprep.subr.bf16.mxu0 0
    %201 = vmatpush1.bf16.msra.mxu0 %v173
    %202 = vmatprep.subr.bf16.mxu0 0
    %203 = vmatpush1.bf16.msra.mxu0 %v172
    %204 = vmatprep.subr.bf16.mxu0 0
    %205 = vmatpush2.bf16.msra.mxu0 0
    %206 = vmatprep.subr.bf16.mxu0 0
    %207 = vmatpush2.bf16.msra.mxu0 0
    %208 = vmatprep.subr.bf16.mxu0 0
    %209 = vmatpush2.bf16.msra.mxu0 0
    %210 = vmatprep.subr.bf16.mxu0 0
    %211 = vmatpush2.bf16.msra.mxu0 0
    %212 = vmatprep.subr.bf16.mxu0 0
    %213 = vmatpush2.bf16.msra.mxu0 0
    %214 = vmatprep.subr.bf16.mxu0 0
    %215 = vmatpush2.bf16.msra.mxu0 0
    %216 = vmatprep.subr.bf16.mxu0 0
    %217 = vmatpush2.bf16.msra.mxu0 0
    %218 = vmatprep.subr.bf16.mxu0 0
    %219 = vmatpush2.bf16.msra.mxu0 0
    %220 = vmatprep.mubr.bf16.mxu0 0
    %221 = vmatmul.mubr.bf16.gmra.mxu0 %v100
    %v222 = vpop.f32.mrf.mxu0
    %v223 = vadd.f32 0.0, %v222
    %v224 = vpop.f32.mrf.mxu0
    %v225 = vpop.f32.mrf.mxu0
    %v226 = vadd.f32 0.0, %v225
    %v227 = vpop.f32.mrf.mxu0
    %228 = vmatprep.mubr.bf16.mxu0 0
    %229 = vmatmul.mubr.bf16.gmra.mxu0 %v101
    %v230 = vpop.f32.mrf.mxu0
    %v231 = vadd.f32 0.0, %v230
    %v232 = vpop.f32.mrf.mxu0
    %v233 = vpop.f32.mrf.mxu0
    %v234 = vadd.f32 0.0, %v233
    %v235 = vpop.f32.mrf.mxu0
    %236 = vmatprep.mubr.bf16.mxu0 0
    %237 = vmatmul.mubr.bf16.gmra.mxu0 %v102
    %v238 = vpop.f32.mrf.mxu0
    %v239 = vadd.f32 0.0, %v238
    %v240 = vpop.f32.mrf.mxu0
    %v241 = vpop.f32.mrf.mxu0
    %v242 = vadd.f32 0.0, %v241
    %v243 = vpop.f32.mrf.mxu0
    %244 = vmatprep.mubr.bf16.mxu0 0
    %245 = vmatmul.mubr.bf16.gmra.mxu0 %v103
    %v246 = vpop.f32.mrf.mxu0
    %v247 = vadd.f32 0.0, %v246
    %v248 = vpop.f32.mrf.mxu0
    %v249 = vpop.f32.mrf.mxu0
    %v250 = vadd.f32 0.0, %v249
    %v251 = vpop.f32.mrf.mxu0
    %252 = vmatprep.mubr.bf16.mxu0 0
    %253 = vmatmul.mubr.bf16.gmra.mxu0 %v104
    %v254 = vpop.f32.mrf.mxu0
    %v255 = vadd.f32 0.0, %v254
    %v256 = vpop.f32.mrf.mxu0
    %v257 = vpop.f32.mrf.mxu0
    %v258 = vadd.f32 0.0, %v257
    %v259 = vpop.f32.mrf.mxu0
    %260 = vmatprep.mubr.bf16.mxu0 0
    %261 = vmatmul.mubr.bf16.gmra.mxu0 %v105
    %v262 = vpop.f32.mrf.mxu0
    %v263 = vadd.f32 0.0, %v262
    %v264 = vpop.f32.mrf.mxu0
    %v265 = vpop.f32.mrf.mxu0
    %v266 = vadd.f32 0.0, %v265
    %v267 = vpop.f32.mrf.mxu0
    %268 = vmatprep.mubr.bf16.mxu0 0
    %269 = vmatmul.mubr.bf16.gmra.mxu0 %v106
    %v270 = vpop.f32.mrf.mxu0
    %v271 = vadd.f32 0.0, %v270
    %v272 = vpop.f32.mrf.mxu0
    %v273 = vpop.f32.mrf.mxu0
    %v274 = vadd.f32 0.0, %v273
    %v275 = vpop.f32.mrf.mxu0
    %276 = vmatprep.mubr.bf16.mxu0 0
    %277 = vmatmul.mubr.bf16.gmra.mxu0 %v107
    %v278 = vpop.f32.mrf.mxu0
    %v279 = vadd.f32 0.0, %v278
    %v280 = vpop.f32.mrf.mxu0
    %v281 = vpop.f32.mrf.mxu0
    %v282 = vadd.f32 0.0, %v281
    %v283 = vpop.f32.mrf.mxu0
    %284 = vdwg.mxu0
    %v285 = vadd.f32 %v108, %v223
    %v286 = vadd.f32 %v109, %v226
    %v287 = vadd.f32 %v110, %v231
    %v288 = vadd.f32 %v111, %v234
    %v289 = vadd.f32 %v112, %v239
    %v290 = vadd.f32 %v113, %v242
    %v291 = vadd.f32 %v114, %v247
    %v292 = vadd.f32 %v115, %v250
    %v293 = vadd.f32 %v116, %v255
    %v294 = vadd.f32 %v117, %v258
    %v295 = vadd.f32 %v118, %v263
    %v296 = vadd.f32 %v119, %v266
    %v297 = vadd.f32 %v120, %v271
    %v298 = vadd.f32 %v121, %v274
    %v299 = vadd.f32 %v122, %v279
    %v300 = vadd.f32 %v123, %v282
    %301 = vst [vmem:[#allocation2] sm:$0xff] %v285
    %302 = vst [vmem:[#allocation2 + $0x8] sm:$0xff] %v286
    %303 = vst [vmem:[#allocation2 + $0x10] sm:$0xff] %v287
    %304 = vst [vmem:[#allocation2 + $0x18] sm:$0xff] %v288
    %305 = vst [vmem:[#allocation2 + $0x20] sm:$0xff] %v289
    %306 = vst [vmem:[#allocation2 + $0x28] sm:$0xff] %v290
    %307 = vst [vmem:[#allocation2 + $0x30] sm:$0xff] %v291
    %308 = vst [vmem:[#allocation2 + $0x38] sm:$0xff] %v292
    %309 = vst [vmem:[#allocation2 + $0x40] sm:$0xff] %v293
    %310 = vst [vmem:[#allocation2 + $0x48] sm:$0xff] %v294
    %311 = vst [vmem:[#allocation2 + $0x50] sm:$0xff] %v295
    %312 = vst [vmem:[#allocation2 + $0x58] sm:$0xff] %v296
    %313 = vst [vmem:[#allocation2 + $0x60] sm:$0xff] %v297
    %314 = vst [vmem:[#allocation2 + $0x68] sm:$0xff] %v298
    %315 = vst [vmem:[#allocation2 + $0x70] sm:$0xff] %v299
    %316 = vst [vmem:[#allocation2 + $0x78] sm:$0xff] %v300
    // Predicated region
    $region42: #{tpu_custom_call.1} parent=1 // pred_check
      %p317 = pneg %p76
    $region43: #{tpu_custom_call.1} parent=1 // pred_check_branch
      %319 = sbr.rel (%p317) target = $region45
    $region44: #{tpu_custom_call.1} parent=1 // pred_region
      %v320 = vld [vmem:[#allocation2] sm:$0xff]
      %v321 = vld [vmem:[#allocation2 + $0x8] sm:$0xff]
      %v322 = vld [vmem:[#allocation2 + $0x10] sm:$0xff]
      %v323 = vld [vmem:[#allocation2 + $0x18] sm:$0xff]
      %v324 = vld [vmem:[#allocation2 + $0x20] sm:$0xff]
      %v325 = vld [vmem:[#allocation2 + $0x28] sm:$0xff]
      %v326 = vld [vmem:[#allocation2 + $0x30] sm:$0xff]
      %v327 = vld [vmem:[#allocation2 + $0x38] sm:$0xff]
      %v328 = vld [vmem:[#allocation2 + $0x40] sm:$0xff]
      %v329 = vld [vmem:[#allocation2 + $0x48] sm:$0xff]
      %v330 = vld [vmem:[#allocation2 + $0x50] sm:$0xff]
      %v331 = vld [vmem:[#allocation2 + $0x58] sm:$0xff]
      %v332 = vld [vmem:[#allocation2 + $0x60] sm:$0xff]
      %v333 = vld [vmem:[#allocation2 + $0x68] sm:$0xff]
      %v334 = vld [vmem:[#allocation2 + $0x70] sm:$0xff]
      %v335 = vld [vmem:[#allocation2 + $0x78] sm:$0xff]
      %v336 = vld [vmem:[#allocation9] sm:$0xff]
      %v337 = vld [vmem:[#allocation9 + $0x8] sm:$0xff]
      %v338 = vld [vmem:[#allocation9 + $0x10] sm:$0xff]
      %v339 = vld [vmem:[#allocation9 + $0x18] sm:$0xff]
      %v340 = vld [vmem:[#allocation9 + $0x20] sm:$0xff]
      %v341 = vld [vmem:[#allocation9 + $0x28] sm:$0xff]
      %v342 = vld [vmem:[#allocation9 + $0x30] sm:$0xff]
      %v343 = vld [vmem:[#allocation9 + $0x38] sm:$0xff]
      %v344 = vld [vmem:[#allocation9 + $0x40] sm:$0xff]
      %v345 = vld [vmem:[#allocation9 + $0x48] sm:$0xff]
      %v346 = vld [vmem:[#allocation9 + $0x50] sm:$0xff]
      %v347 = vld [vmem:[#allocation9 + $0x58] sm:$0xff]
      %v348 = vld [vmem:[#allocation9 + $0x60] sm:$0xff]
      %v349 = vld [vmem:[#allocation9 + $0x68] sm:$0xff]
      %v350 = vld [vmem:[#allocation9 + $0x70] sm:$0xff]
      %v351 = vld [vmem:[#allocation9 + $0x78] sm:$0xff]
      %v352 = vld [vmem:[#allocation9 + $0x80] sm:$0xff]
      %v353 = vld [vmem:[#allocation9 + $0x88] sm:$0xff]
      %v354 = vld [vmem:[#allocation9 + $0x90] sm:$0xff]
      %v355 = vld [vmem:[#allocation9 + $0x98] sm:$0xff]
      %v356 = vld [vmem:[#allocation9 + $0xa0] sm:$0xff]
      %v357 = vld [vmem:[#allocation9 + $0xa8] sm:$0xff]
      %v358 = vld [vmem:[#allocation9 + $0xb0] sm:$0xff]
      %v359 = vld [vmem:[#allocation9 + $0xb8] sm:$0xff]
      %v360 = vld [vmem:[#allocation9 + $0xc0] sm:$0xff]
      %v361 = vld [vmem:[#allocation9 + $0xc8] sm:$0xff]
      %v362 = vld [vmem:[#allocation9 + $0xd0] sm:$0xff]
      %v363 = vld [vmem:[#allocation9 + $0xd8] sm:$0xff]
      %v364 = vld [vmem:[#allocation9 + $0xe0] sm:$0xff]
      %v365 = vld [vmem:[#allocation9 + $0xe8] sm:$0xff]
      %v366 = vld [vmem:[#allocation9 + $0xf0] sm:$0xff]
      %v367 = vld [vmem:[#allocation9 + $0xf8] sm:$0xff]
      %v368 = vld [vmem:[%s3] sm:$0x1]
      %v369 = vld [vmem:[%s3 + $0x1] sm:$0x1]
      %v371 = vlaneseq
      %v372 = vshrl.u32 %v371, 7
      %v373 = vsub.s32 0, %v372
      %v374 = vrot.slane %v368, %v373
      %376 = vmatprep.subr.mxu0 0.0
      %377 = vmatpush1.msra.mxu0 %v351
      %378 = vmatprep.subr.mxu0 0.0
      %379 = vmatpush1.msra.mxu0 %v350
      %380 = vmatprep.subr.mxu0 0.0
      %381 = vmatpush1.msra.mxu0 %v349
      %382 = vmatprep.subr.mxu0 0.0
      %383 = vmatpush1.msra.mxu0 %v348
      %384 = vmatprep.subr.mxu0 0.0
      %385 = vmatpush1.msra.mxu0 %v347
      %386 = vmatprep.subr.mxu0 0.0
      %387 = vmatpush1.msra.mxu0 %v346
      %388 = vmatprep.subr.mxu0 0.0
      %389 = vmatpush1.msra.mxu0 %v345
      %390 = vmatprep.subr.mxu0 0.0
      %391 = vmatpush1.msra.mxu0 %v344
      %392 = vmatprep.subr.mxu0 0.0
      %393 = vmatpush1.msra.mxu0 %v343
      %394 = vmatprep.subr.mxu0 0.0
      %395 = vmatpush1.msra.mxu0 %v342
      %396 = vmatprep.subr.mxu0 0.0
      %397 = vmatpush1.msra.mxu0 %v341
      %398 = vmatprep.subr.mxu0 0.0
      %399 = vmatpush1.msra.mxu0 %v340
      %400 = vmatprep.subr.mxu0 0.0
      %401 = vmatpush1.msra.mxu0 %v339
      %402 = vmatprep.subr.mxu0 0.0
      %403 = vmatpush1.msra.mxu0 %v338
      %404 = vmatprep.subr.mxu0 0.0
      %405 = vmatpush1.msra.mxu0 %v337
      %406 = vmatprep.subr.mxu0 0.0
      %407 = vmatpush1.msra.mxu0 %v336
      %408 = vmatprep.subr.mxu0 0.0
      %409 = vmatpush2.msra.mxu0 0.0
      %410 = vmatprep.subr.mxu0 0.0
      %411 = vmatpush2.msra.mxu0 0.0
      %412 = vmatprep.subr.mxu0 0.0
      %413 = vmatpush2.msra.mxu0 0.0
      %414 = vmatprep.subr.mxu0 0.0
      %415 = vmatpush2.msra.mxu0 0.0
      %416 = vmatprep.subr.mxu0 0.0
      %417 = vmatpush2.msra.mxu0 0.0
      %418 = vmatprep.subr.mxu0 0.0
      %419 = vmatpush2.msra.mxu0 0.0
      %420 = vmatprep.subr.mxu0 0.0
      %421 = vmatpush2.msra.mxu0 0.0
      %422 = vmatprep.subr.mxu0 0.0
      %423 = vmatpush2.msra.mxu0 0.0
      %424 = vmatprep.subr.mxu0 0.0
      %425 = vmatpush2.msra.mxu0 0.0
      %426 = vmatprep.subr.mxu0 0.0
      %427 = vmatpush2.msra.mxu0 0.0
      %428 = vmatprep.subr.mxu0 0.0
      %429 = vmatpush2.msra.mxu0 0.0
      %430 = vmatprep.subr.mxu0 0.0
      %431 = vmatpush2.msra.mxu0 0.0
      %432 = vmatprep.subr.mxu0 0.0
      %433 = vmatpush2.msra.mxu0 0.0
      %434 = vmatprep.subr.mxu0 0.0
      %435 = vmatpush2.msra.mxu0 0.0
      %436 = vmatprep.subr.mxu0 0.0
      %437 = vmatpush2.msra.mxu0 0.0
      %438 = vmatprep.subr.mxu0 0.0
      %439 = vmatpush2.msra.mxu0 0.0
      %440 = vmatprep.mubr.f32.mxu0 0.0
      %441 = vmatmul.mubr.f32.gmra.mxu0 %v320
      %v442 = vpop.f32.mrf.mxu0
      %v443 = vadd.f32 %v374, %v442
      %v444 = vpop.f32.mrf.mxu0
      %445 = vmatprep.mubr.f32.mxu0 0.0
      %446 = vmatmul.mubr.f32.gmra.mxu0 %v321
      %v447 = vpop.f32.mrf.mxu0
      %v448 = vadd.f32 %v374, %v447
      %v449 = vpop.f32.mrf.mxu0
      %450 = vmatprep.mubr.f32.mxu0 0.0
      %451 = vmatmul.mubr.f32.gmra.mxu0 %v322
      %v452 = vpop.f32.mrf.mxu0
      %v453 = vadd.f32 %v374, %v452
      %v454 = vpop.f32.mrf.mxu0
      %455 = vmatprep.mubr.f32.mxu0 0.0
      %456 = vmatmul.mubr.f32.gmra.mxu0 %v323
      %v457 = vpop.f32.mrf.mxu0
      %v458 = vadd.f32 %v374, %v457
      %v459 = vpop.f32.mrf.mxu0
      %460 = vmatprep.mubr.f32.mxu0 0.0
      %461 = vmatmul.mubr.f32.gmra.mxu0 %v324
      %v462 = vpop.f32.mrf.mxu0
      %v463 = vadd.f32 %v374, %v462
      %v464 = vpop.f32.mrf.mxu0
      %465 = vmatprep.mubr.f32.mxu0 0.0
      %466 = vmatmul.mubr.f32.gmra.mxu0 %v325
      %v467 = vpop.f32.mrf.mxu0
      %v468 = vadd.f32 %v374, %v467
      %v469 = vpop.f32.mrf.mxu0
      %470 = vmatprep.mubr.f32.mxu0 0.0
      %471 = vmatmul.mubr.f32.gmra.mxu0 %v326
      %v472 = vpop.f32.mrf.mxu0
      %v473 = vadd.f32 %v374, %v472
      %v474 = vpop.f32.mrf.mxu0
      %475 = vmatprep.mubr.f32.mxu0 0.0
      %476 = vmatmul.mubr.f32.gmra.mxu0 %v327
      %v477 = vpop.f32.mrf.mxu0
      %v478 = vadd.f32 %v374, %v477
      %v479 = vpop.f32.mrf.mxu0
      %480 = vmatprep.mubr.f32.mxu0 0.0
      %481 = vmatmul.mubr.f32.gmra.mxu0 %v328
      %v482 = vpop.f32.mrf.mxu0
      %v483 = vadd.f32 %v374, %v482
      %v484 = vpop.f32.mrf.mxu0
      %485 = vmatprep.mubr.f32.mxu0 0.0
      %486 = vmatmul.mubr.f32.gmra.mxu0 %v329
      %v487 = vpop.f32.mrf.mxu0
      %v488 = vadd.f32 %v374, %v487
      %v489 = vpop.f32.mrf.mxu0
      %490 = vmatprep.mubr.f32.mxu0 0.0
      %491 = vmatmul.mubr.f32.gmra.mxu0 %v330
      %v492 = vpop.f32.mrf.mxu0
      %v493 = vadd.f32 %v374, %v492
      %v494 = vpop.f32.mrf.mxu0
      %495 = vmatprep.mubr.f32.mxu0 0.0
      %496 = vmatmul.mubr.f32.gmra.mxu0 %v331
      %v497 = vpop.f32.mrf.mxu0
      %v498 = vadd.f32 %v374, %v497
      %v499 = vpop.f32.mrf.mxu0
      %500 = vmatprep.mubr.f32.mxu0 0.0
      %501 = vmatmul.mubr.f32.gmra.mxu0 %v332
      %v502 = vpop.f32.mrf.mxu0
      %v503 = vadd.f32 %v374, %v502
      %v504 = vpop.f32.mrf.mxu0
      %505 = vmatprep.mubr.f32.mxu0 0.0
      %506 = vmatmul.mubr.f32.gmra.mxu0 %v333
      %v507 = vpop.f32.mrf.mxu0
      %v508 = vadd.f32 %v374, %v507
      %v509 = vpop.f32.mrf.mxu0
      %510 = vmatprep.mubr.f32.mxu0 0.0
      %511 = vmatmul.mubr.f32.gmra.mxu0 %v334
      %v512 = vpop.f32.mrf.mxu0
      %v513 = vadd.f32 %v374, %v512
      %v514 = vpop.f32.mrf.mxu0
      %515 = vmatprep.mubr.f32.mxu0 0.0
      %516 = vmatmul.mubr.f32.gmra.mxu0 %v335
      %v517 = vpop.f32.mrf.mxu0
      %v518 = vadd.f32 %v374, %v517
      %v519 = vpop.f32.mrf.mxu0
      %520 = vdwg.mxu0
      %s521 = sld [smem:[#allocation10]]
      %vm522 = vcmp.ge.f32.partialorder %v443, 0.0
      %vm523 = vcmp.ge.f32.partialorder %v448, 0.0
      %vm524 = vcmp.ge.f32.partialorder %v453, 0.0
      %vm525 = vcmp.ge.f32.partialorder %v458, 0.0
      %vm526 = vcmp.ge.f32.partialorder %v463, 0.0
      %vm527 = vcmp.ge.f32.partialorder %v468, 0.0
      %vm528 = vcmp.ge.f32.partialorder %v473, 0.0
      %vm529 = vcmp.ge.f32.partialorder %v478, 0.0
      %vm530 = vcmp.ge.f32.partialorder %v483, 0.0
      %vm531 = vcmp.ge.f32.partialorder %v488, 0.0
      %vm532 = vcmp.ge.f32.partialorder %v493, 0.0
      %vm533 = vcmp.ge.f32.partialorder %v498, 0.0
      %vm534 = vcmp.ge.f32.partialorder %v503, 0.0
      %vm535 = vcmp.ge.f32.partialorder %v508, 0.0
      %vm536 = vcmp.ge.f32.partialorder %v513, 0.0
      %vm537 = vcmp.ge.f32.partialorder %v518, 0.0
      %v538 = vstv %s521
      %v539 = vmul.f32 %v538, %v443
      %v540 = vmul.f32 %v538, %v448
      %v541 = vmul.f32 %v538, %v453
      %v542 = vmul.f32 %v538, %v458
      %v543 = vmul.f32 %v538, %v463
      %v544 = vmul.f32 %v538, %v468
      %v545 = vmul.f32 %v538, %v473
      %v546 = vmul.f32 %v538, %v478
      %v547 = vmul.f32 %v538, %v483
      %v548 = vmul.f32 %v538, %v488
      %v549 = vmul.f32 %v538, %v493
      %v550 = vmul.f32 %v538, %v498
      %v551 = vmul.f32 %v538, %v503
      %v552 = vmul.f32 %v538, %v508
      %v553 = vmul.f32 %v538, %v513
      %v554 = vmul.f32 %v538, %v518
      %v555 = vsel %vm522, %v443, %v539
      %v556 = vsel %vm523, %v448, %v540
      %v557 = vsel %vm524, %v453, %v541
      %v558 = vsel %vm525, %v458, %v542
      %v559 = vsel %vm526, %v463, %v543
      %v560 = vsel %vm527, %v468, %v544
      %v561 = vsel %vm528, %v473, %v545
      %v562 = vsel %vm529, %v478, %v546
      %v563 = vsel %vm530, %v483, %v547
      %v564 = vsel %vm531, %v488, %v548
      %v565 = vsel %vm532, %v493, %v549
      %v566 = vsel %vm533, %v498, %v550
      %v567 = vsel %vm534, %v503, %v551
      %v568 = vsel %vm535, %v508, %v552
      %v569 = vsel %vm536, %v513, %v553
      %v570 = vsel %vm537, %v518, %v554
      %v572 = vlaneseq
      %v573 = vshrl.u32 %v572, 7
      %v574 = vsub.s32 0, %v573
      %v575 = vrot.slane %v369, %v574
      %577 = vmatprep.subr.mxu0 0.0
      %578 = vmatpush1.msra.mxu0 %v367
      %579 = vmatprep.subr.mxu0 0.0
      %580 = vmatpush1.msra.mxu0 %v366
      %581 = vmatprep.subr.mxu0 0.0
      %582 = vmatpush1.msra.mxu0 %v365
      %583 = vmatprep.subr.mxu0 0.0
      %584 = vmatpush1.msra.mxu0 %v364
      %585 = vmatprep.subr.mxu0 0.0
      %586 = vmatpush1.msra.mxu0 %v363
      %587 = vmatprep.subr.mxu0 0.0
      %588 = vmatpush1.msra.mxu0 %v362
      %589 = vmatprep.subr.mxu0 0.0
      %590 = vmatpush1.msra.mxu0 %v361
      %591 = vmatprep.subr.mxu0 0.0
      %592 = vmatpush1.msra.mxu0 %v360
      %593 = vmatprep.subr.mxu0 0.0
      %594 = vmatpush1.msra.mxu0 %v359
      %595 = vmatprep.subr.mxu0 0.0
      %596 = vmatpush1.msra.mxu0 %v358
      %597 = vmatprep.subr.mxu0 0.0
      %598 = vmatpush1.msra.mxu0 %v357
      %599 = vmatprep.subr.mxu0 0.0
      %600 = vmatpush1.msra.mxu0 %v356
      %601 = vmatprep.subr.mxu0 0.0
      %602 = vmatpush1.msra.mxu0 %v355
      %603 = vmatprep.subr.mxu0 0.0
      %604 = vmatpush1.msra.mxu0 %v354
      %605 = vmatprep.subr.mxu0 0.0
      %606 = vmatpush1.msra.mxu0 %v353
      %607 = vmatprep.subr.mxu0 0.0
      %608 = vmatpush1.msra.mxu0 %v352
      %609 = vmatprep.subr.mxu0 0.0
      %610 = vmatpush2.msra.mxu0 0.0
      %611 = vmatprep.subr.mxu0 0.0
      %612 = vmatpush2.msra.mxu0 0.0
      %613 = vmatprep.subr.mxu0 0.0
      %614 = vmatpush2.msra.mxu0 0.0
      %615 = vmatprep.subr.mxu0 0.0
      %616 = vmatpush2.msra.mxu0 0.0
      %617 = vmatprep.subr.mxu0 0.0
      %618 = vmatpush2.msra.mxu0 0.0
      %619 = vmatprep.subr.mxu0 0.0
      %620 = vmatpush2.msra.mxu0 0.0
      %621 = vmatprep.subr.mxu0 0.0
      %622 = vmatpush2.msra.mxu0 0.0
      %623 = vmatprep.subr.mxu0 0.0
      %624 = vmatpush2.msra.mxu0 0.0
      %625 = vmatprep.subr.mxu0 0.0
      %626 = vmatpush2.msra.mxu0 0.0
      %627 = vmatprep.subr.mxu0 0.0
      %628 = vmatpush2.msra.mxu0 0.0
      %629 = vmatprep.subr.mxu0 0.0
      %630 = vmatpush2.msra.mxu0 0.0
      %631 = vmatprep.subr.mxu0 0.0
      %632 = vmatpush2.msra.mxu0 0.0
      %633 = vmatprep.subr.mxu0 0.0
      %634 = vmatpush2.msra.mxu0 0.0
      %635 = vmatprep.subr.mxu0 0.0
      %636 = vmatpush2.msra.mxu0 0.0
      %637 = vmatprep.subr.mxu0 0.0
      %638 = vmatpush2.msra.mxu0 0.0
      %639 = vmatprep.subr.mxu0 0.0
      %640 = vmatpush2.msra.mxu0 0.0
      %641 = vmatprep.mubr.f32.mxu0 0.0
      %642 = vmatmul.mubr.f32.gmra.mxu0 %v555
      %v643 = vpop.f32.mrf.mxu0
      %v644 = vadd.f32 %v575, %v643
      %v645 = vpop.f32.mrf.mxu0
      %646 = vmatprep.mubr.f32.mxu0 0.0
      %647 = vmatmul.mubr.f32.gmra.mxu0 %v556
      %v648 = vpop.f32.mrf.mxu0
      %v649 = vadd.f32 %v575, %v648
      %v650 = vpop.f32.mrf.mxu0
      %651 = vmatprep.mubr.f32.mxu0 0.0
      %652 = vmatmul.mubr.f32.gmra.mxu0 %v557
      %v653 = vpop.f32.mrf.mxu0
      %v654 = vadd.f32 %v575, %v653
      %v655 = vpop.f32.mrf.mxu0
      %656 = vmatprep.mubr.f32.mxu0 0.0
      %657 = vmatmul.mubr.f32.gmra.mxu0 %v558
      %v658 = vpop.f32.mrf.mxu0
      %v659 = vadd.f32 %v575, %v658
      %v660 = vpop.f32.mrf.mxu0
      %661 = vmatprep.mubr.f32.mxu0 0.0
      %662 = vmatmul.mubr.f32.gmra.mxu0 %v559
      %v663 = vpop.f32.mrf.mxu0
      %v664 = vadd.f32 %v575, %v663
      %v665 = vpop.f32.mrf.mxu0
      %666 = vmatprep.mubr.f32.mxu0 0.0
      %667 = vmatmul.mubr.f32.gmra.mxu0 %v560
      %v668 = vpop.f32.mrf.mxu0
      %v669 = vadd.f32 %v575, %v668
      %v670 = vpop.f32.mrf.mxu0
      %671 = vmatprep.mubr.f32.mxu0 0.0
      %672 = vmatmul.mubr.f32.gmra.mxu0 %v561
      %v673 = vpop.f32.mrf.mxu0
      %v674 = vadd.f32 %v575, %v673
      %v675 = vpop.f32.mrf.mxu0
      %676 = vmatprep.mubr.f32.mxu0 0.0
      %677 = vmatmul.mubr.f32.gmra.mxu0 %v562
      %v678 = vpop.f32.mrf.mxu0
      %v679 = vadd.f32 %v575, %v678
      %v680 = vpop.f32.mrf.mxu0
      %681 = vmatprep.mubr.f32.mxu0 0.0
      %682 = vmatmul.mubr.f32.gmra.mxu0 %v563
      %v683 = vpop.f32.mrf.mxu0
      %v684 = vadd.f32 %v575, %v683
      %v685 = vpop.f32.mrf.mxu0
      %686 = vmatprep.mubr.f32.mxu0 0.0
      %687 = vmatmul.mubr.f32.gmra.mxu0 %v564
      %v688 = vpop.f32.mrf.mxu0
      %v689 = vadd.f32 %v575, %v688
      %v690 = vpop.f32.mrf.mxu0
      %691 = vmatprep.mubr.f32.mxu0 0.0
      %692 = vmatmul.mubr.f32.gmra.mxu0 %v565
      %v693 = vpop.f32.mrf.mxu0
      %v694 = vadd.f32 %v575, %v693
      %v695 = vpop.f32.mrf.mxu0
      %696 = vmatprep.mubr.f32.mxu0 0.0
      %697 = vmatmul.mubr.f32.gmra.mxu0 %v566
      %v698 = vpop.f32.mrf.mxu0
      %v699 = vadd.f32 %v575, %v698
      %v700 = vpop.f32.mrf.mxu0
      %701 = vmatprep.mubr.f32.mxu0 0.0
      %702 = vmatmul.mubr.f32.gmra.mxu0 %v567
      %v703 = vpop.f32.mrf.mxu0
      %v704 = vadd.f32 %v575, %v703
      %v705 = vpop.f32.mrf.mxu0
      %706 = vmatprep.mubr.f32.mxu0 0.0
      %707 = vmatmul.mubr.f32.gmra.mxu0 %v568
      %v708 = vpop.f32.mrf.mxu0
      %v709 = vadd.f32 %v575, %v708
      %v710 = vpop.f32.mrf.mxu0
      %711 = vmatprep.mubr.f32.mxu0 0.0
      %712 = vmatmul.mubr.f32.gmra.mxu0 %v569
      %v713 = vpop.f32.mrf.mxu0
      %v714 = vadd.f32 %v575, %v713
      %v715 = vpop.f32.mrf.mxu0
      %716 = vmatprep.mubr.f32.mxu0 0.0
      %717 = vmatmul.mubr.f32.gmra.mxu0 %v570
      %v718 = vpop.f32.mrf.mxu0
      %v719 = vadd.f32 %v575, %v718
      %v720 = vpop.f32.mrf.mxu0
      %721 = vdwg.mxu0
      %s722 = sld [smem:[#allocation10 + $0x1]]
      %vm723 = vcmp.ge.f32.partialorder %v644, 0.0
      %vm724 = vcmp.ge.f32.partialorder %v649, 0.0
      %vm725 = vcmp.ge.f32.partialorder %v654, 0.0
      %vm726 = vcmp.ge.f32.partialorder %v659, 0.0
      %vm727 = vcmp.ge.f32.partialorder %v664, 0.0
      %vm728 = vcmp.ge.f32.partialorder %v669, 0.0
      %vm729 = vcmp.ge.f32.partialorder %v674, 0.0
      %vm730 = vcmp.ge.f32.partialorder %v679, 0.0
      %vm731 = vcmp.ge.f32.partialorder %v684, 0.0
      %vm732 = vcmp.ge.f32.partialorder %v689, 0.0
      %vm733 = vcmp.ge.f32.partialorder %v694, 0.0
      %vm734 = vcmp.ge.f32.partialorder %v699, 0.0
      %vm735 = vcmp.ge.f32.partialorder %v704, 0.0
      %vm736 = vcmp.ge.f32.partialorder %v709, 0.0
      %vm737 = vcmp.ge.f32.partialorder %v714, 0.0
      %vm738 = vcmp.ge.f32.partialorder %v719, 0.0
      %v739 = vstv %s722
      %v740 = vmul.f32 %v739, %v644
      %v741 = vmul.f32 %v739, %v649
      %v742 = vmul.f32 %v739, %v654
      %v743 = vmul.f32 %v739, %v659
      %v744 = vmul.f32 %v739, %v664
      %v745 = vmul.f32 %v739, %v669
      %v746 = vmul.f32 %v739, %v674
      %v747 = vmul.f32 %v739, %v679
      %v748 = vmul.f32 %v739, %v684
      %v749 = vmul.f32 %v739, %v689
      %v750 = vmul.f32 %v739, %v694
      %v751 = vmul.f32 %v739, %v699
      %v752 = vmul.f32 %v739, %v704
      %v753 = vmul.f32 %v739, %v709
      %v754 = vmul.f32 %v739, %v714
      %v755 = vmul.f32 %v739, %v719
      %v756 = vsel %vm723, %v644, %v740
      %v757 = vsel %vm724, %v649, %v741
      %v758 = vsel %vm725, %v654, %v742
      %v759 = vsel %vm726, %v659, %v743
      %v760 = vsel %vm727, %v664, %v744
      %v761 = vsel %vm728, %v669, %v745
      %v762 = vsel %vm729, %v674, %v746
      %v763 = vsel %vm730, %v679, %v747
      %v764 = vsel %vm731, %v684, %v748
      %v765 = vsel %vm732, %v689, %v749
      %v766 = vsel %vm733, %v694, %v750
      %v767 = vsel %vm734, %v699, %v751
      %v768 = vsel %vm735, %v704, %v752
      %v769 = vsel %vm736, %v709, %v753
      %v770 = vsel %vm737, %v714, %v754
      %v771 = vsel %vm738, %v719, %v755
      %v772 = vpack.c.bf16 %v757, %v756
      %v773 = vpack.c.bf16 %v759, %v758
      %v774 = vpack.c.bf16 %v761, %v760
      %v775 = vpack.c.bf16 %v763, %v762
      %v776 = vpack.c.bf16 %v765, %v764
      %v777 = vpack.c.bf16 %v767, %v766
      %v778 = vpack.c.bf16 %v769, %v768
      %v779 = vpack.c.bf16 %v771, %v770
      %v788 = vunpack.c.l.b16 %v772
      %v789 = vunpack.c.h.b16 %v772
      %v790 = vunpack.c.l.b16 %v773
      %v791 = vunpack.c.h.b16 %v773
      %v792 = vunpack.c.l.b16 %v774
      %v793 = vunpack.c.h.b16 %v774
      %v794 = vunpack.c.l.b16 %v775
      %v795 = vunpack.c.h.b16 %v775
      %v796 = vunpack.c.l.b16 %v776
      %v797 = vunpack.c.h.b16 %v776
      %v798 = vunpack.c.l.b16 %v777
      %v799 = vunpack.c.h.b16 %v777
      %v800 = vunpack.c.l.b16 %v778
      %v801 = vunpack.c.h.b16 %v778
      %v802 = vunpack.c.l.b16 %v779
      %v803 = vunpack.c.h.b16 %v779
      %v804 = vpack.c.b16 %v788, %v788
      %v805 = vpack.c.b16 %v789, %v789
      %v806 = vpack.c.b16 %v790, %v790
      %v807 = vpack.c.b16 %v791, %v791
      %v808 = vpack.c.b16 %v792, %v792
      %v809 = vpack.c.b16 %v793, %v793
      %v810 = vpack.c.b16 %v794, %v794
      %v811 = vpack.c.b16 %v795, %v795
      %v812 = vpack.c.b16 %v796, %v796
      %v813 = vpack.c.b16 %v797, %v797
      %v814 = vpack.c.b16 %v798, %v798
      %v815 = vpack.c.b16 %v799, %v799
      %v816 = vpack.c.b16 %v800, %v800
      %v817 = vpack.c.b16 %v801, %v801
      %v818 = vpack.c.b16 %v802, %v802
      %v819 = vpack.c.b16 %v803, %v803
      %836 = vst [vmem:[#allocation11] sm:$0xf] %v804
      %837 = vst [vmem:[#allocation11 + $0x4] sm:$0xf] %v805
      %838 = vst [vmem:[#allocation11 + $0x8] sm:$0xf] %v806
      %839 = vst [vmem:[#allocation11 + $0xc] sm:$0xf] %v807
      %840 = vst [vmem:[#allocation11 + $0x10] sm:$0xf] %v808
      %841 = vst [vmem:[#allocation11 + $0x14] sm:$0xf] %v809
      %842 = vst [vmem:[#allocation11 + $0x18] sm:$0xf] %v810
      %843 = vst [vmem:[#allocation11 + $0x1c] sm:$0xf] %v811
      %844 = vst [vmem:[#allocation11 + $0x20] sm:$0xf] %v812
      %845 = vst [vmem:[#allocation11 + $0x24] sm:$0xf] %v813
      %846 = vst [vmem:[#allocation11 + $0x28] sm:$0xf] %v814
      %847 = vst [vmem:[#allocation11 + $0x2c] sm:$0xf] %v815
      %848 = vst [vmem:[#allocation11 + $0x30] sm:$0xf] %v816
      %849 = vst [vmem:[#allocation11 + $0x34] sm:$0xf] %v817
      %850 = vst [vmem:[#allocation11 + $0x38] sm:$0xf] %v818
      %851 = vst [vmem:[#allocation11 + $0x3c] sm:$0xf] %v819
    $region45: #{tpu_custom_call.1} parent=1 // pred_fallthru
      _
    // Predicated region
    $region46: #{tpu_custom_call.1} parent=1 // pred_check
      _
    $region47: #{tpu_custom_call.1} parent=1 // pred_check_branch
      %853 = sbr.rel (0) target = $region49
    $region48: #{tpu_custom_call.1} parent=1 // pred_region
      %s855 = ssub.s32 1024, 1024
      %856 = vsyncadd [#allocation5], %s855
      %s857 = sshll.u32 [#allocation11], 4
      %s858 = int_to_ptr.vmem [resolvable:$true] %s857
      %863 = dma.vmem_to_hbm [thread:$0]  %s858, 1024, %s5, [#allocation5], 64, 64, 4
    $region49: #{tpu_custom_call.1} parent=1 // pred_fallthru
      _
    // Predicated region
    $region50: #{tpu_custom_call.1} parent=1 // pred_check
      _
    $region51: #{tpu_custom_call.1} parent=1 // pred_check_branch
      %865 = sbr.rel (0) target = $region53
    $region52: #{tpu_custom_call.1} parent=1 // pred_region
      %866 = dma.done [#allocation5], 1024
    $region53: #{tpu_custom_call.1} parent=1 // pred_fallthru
      _
    %867 = vsyncpa [#allocation4], 1
    %868 = vsyncpa [#allocation8], 1
    %869 = vsyncpa [#allocation5], 1
    %870 = vsyncpa [#allocation6], 1

</llo_original>
